<compile_context>
chip_gen: v5e
topology: v5e:2x2
jax: 0.10.0
libtpu: 0.0.40
codegen_flags: <defaults>
</compile_context>

<pallas_src>
import math
import functools

import jax
import jax.numpy as jnp
import numpy as np
from jax.experimental import pallas as pl
from jax.experimental.pallas import tpu as pltpu


# ----------------------------- hardware / tiling helpers ----------------------

def _vmem_capacity_bytes():
    """Per-core VMEM capacity; conservative 64 MiB default (v7x per-TC)."""
    try:
        info = pltpu.get_tpu_info()
        cap = getattr(info, "vmem_capacity_bytes", None)
        if cap:
            return int(cap)
    except Exception:
        pass
    return 64 * 1024 * 1024


def _tile_budget_bytes(vmem_cap):
    # ~8 MiB tiles on 128 MiB chips (v5e/v6e), ~4 MiB on 64 MiB/TC (v7x).
    return int(min(16 << 20, max(2 << 20, vmem_cap // 16)))


def _sublane_multiple(dtype):
    itemsize = jnp.dtype(dtype).itemsize
    return max(8, 32 // itemsize)         # 8 for f32, 16 for bf16, 32 for int8


def _round_up(x, m):
    return ((x + m - 1) // m) * m


def _largest_aligned_divisor(n, align, cap):
    """Largest d with d | n, align | d, d <= cap.  Assumes align | n, cap >= align."""
    m = n // align
    kmax = max(1, min(m, cap // align))
    for k in range(kmax, 0, -1):
        if m % k == 0:
            return k * align
    return align


def _largest_divisor_leq(n, cap):
    cap = max(1, min(cap, n))
    for d in range(cap, 0, -1):
        if n % d == 0:
            return d
    return 1


def _choose_rows(nrows, sub, budget_rows, prefer_multi=True):
    """Row-tile size: sublane aligned, <= budget, no padding needed."""
    cap = max(sub, (min(budget_rows, nrows) // sub) * sub)
    if nrows % sub == 0:
        ts = _largest_aligned_divisor(nrows, sub, cap)
        # Prefer >= 2 grid steps (megacore on v7x) when a clean split exists.
        if prefer_multi and ts == nrows and nrows // sub >= 2:
            ts = _largest_aligned_divisor(nrows, sub, nrows // 2)
        return ts
    if nrows <= budget_rows:
        return nrows                       # full-extent block is always legal
    return cap                             # ragged last tile; OOB stores are masked


def _choose_cond_tiles(B, S, D, dtype, tile_budget):
    """(TB, TS): batch-block and seq-block sizes for the conditional path."""
    sub = _sublane_multiple(dtype)
    itemsize = jnp.dtype(dtype).itemsize
    budget_rows = max(sub, tile_budget // max(1, D * itemsize))
    if S > budget_rows:
        return 1, _choose_rows(S, sub, budget_rows, prefer_multi=False)
    # Whole sequences fit: pack multiple batch elements per tile.
    tb = _largest_divisor_leq(B, max(1, budget_rows // S))
    if tb == B and B >= 2:                 # keep >= 2 grid steps for megacore
        tb = _largest_divisor_leq(B, B // 2)
    return tb, S


def _vmem_limit_bytes(tile_rows, d, dtype, vmem_cap):
    itemsize = jnp.dtype(dtype).itemsize
    tile = tile_rows * d * itemsize
    # double-buffered in+out tiles + f32 intermediates + params + headroom
    need = 4 * tile + 8 * tile_rows * d + (2 << 20)
    return int(min(max(need, 8 << 20), vmem_cap * 3 // 4))


# ----------------------------- kernel ------------------------------------------

def _ln_rows_kernel(x_ref, gamma_ref, beta_ref, o_ref, *, eps, center, scale):
    # x_ref / o_ref : (TS, D) or (TB, TS, D);  gamma/beta : (1, D) or (TB, 1, D)
    x = x_ref[...]
    if x.dtype != jnp.float32:
        x = x.astype(jnp.float32)
    out = x
    if center:
        mean = jnp.mean(x, axis=-1, keepdims=True)
        out = x - mean
    if scale:
        # centered two-pass variance (matches the reference numerics)
        var = jnp.mean(out * out, axis=-1, keepdims=True)
        inv = pl.reciprocal(var + eps, approx=False)      # per-row, exact
        out = out * (inv * inv)                           # faithful: / (var+eps)**2
        g = gamma_ref[...]
        if g.dtype != jnp.float32:
            g = g.astype(jnp.float32)
        out = out * g
    if center:
        b = beta_ref[...]
        if b.dtype != jnp.float32:
            b = b.astype(jnp.float32)
        out = out + b
    o_ref[...] = out.astype(o_ref.dtype)


# ----------------------------- module -------------------------------------------

class LayerNorm:
    """JAX/Pallas port of the TPLinker LayerNorm module (forward only)."""

    def __init__(self, input_dim, cond_dim=0, center=True, scale=True,
                 epsilon=None, conditional=False, hidden_units=None,
                 hidden_activation='linear', hidden_initializer='xaiver', **kwargs):
        self.center = center
        self.scale = scale
        self.conditional = conditional
        self.hidden_units = hidden_units
        self.hidden_initializer = hidden_initializer
        self.epsilon = epsilon or 1e-12
        self.input_dim = input_dim
        self.cond_dim = cond_dim

        # parameters, deterministic init, same shapes/values as the PyTorch module
        self.beta = jnp.zeros((1, input_dim), jnp.float32) if center else None
        self.gamma = jnp.ones((1, input_dim), jnp.float32) if scale else None

        if conditional:
            if hidden_units is not None:
                # default 'xaiver' (typo in reference) matches neither init branch,
                # so the weight keeps torch.nn.Linear's default init; emulate it
                # deterministically (uniform(-1/sqrt(fan_in), 1/sqrt(fan_in))).
                bound = 1.0 / math.sqrt(cond_dim)
                self.hidden_dense_w = jax.random.uniform(
                    jax.random.PRNGKey(42), (hidden_units, cond_dim),
                    jnp.float32, -bound, bound)
            else:
                self.hidden_dense_w = None
            eff_cond = hidden_units if hidden_units is not None else cond_dim
            # initialize_weights(): beta_dense / gamma_dense weights = 0
            self.beta_dense_w = (jnp.zeros((input_dim, eff_cond), jnp.float32)
                                 if center else None)
            self.gamma_dense_w = (jnp.zeros((input_dim, eff_cond), jnp.float32)
                                  if scale else None)

    # ------------------------------------------------------------------------
    def __call__(self, inputs, cond=None):
        B, S, D = inputs.shape
        assert D == self.input_dim

        vmem_cap = _vmem_capacity_bytes()
        tile_budget = _tile_budget_bytes(vmem_cap)
        sub = _sublane_multiple(inputs.dtype)
        itemsize = jnp.dtype(inputs.dtype).itemsize

        gamma = self.gamma if self.gamma is not None else jnp.ones((1, D), jnp.float32)
        beta = self.beta if self.beta is not None else jnp.zeros((1, D), jnp.float32)

        kernel = functools.partial(_ln_rows_kernel, eps=self.epsilon,
                                   center=self.center, scale=self.scale)

        if not self.conditional:
            # ---- plain path: flatten to rows, stream big row tiles ------------
            R = B * S
            x2 = inputs.reshape(R, D)
            budget_rows = max(sub, tile_budget // max(1, D * itemsize))
            TS = _choose_rows(R, sub, budget_rows)
            grid = (pl.cdiv(R, TS),)

            out = pl.pallas_call(
                kernel,
                out_shape=jax.ShapeDtypeStruct((R, D), inputs.dtype),
                grid=grid,
                in_specs=[pl.BlockSpec((TS, D), lambda i: (i, 0)),
                          pl.BlockSpec((1, D), lambda i: (0, 0)),
                          pl.BlockSpec((1, D), lambda i: (0, 0))],
                out_specs=pl.BlockSpec((TS, D), lambda i: (i, 0)),
                compiler_params=pltpu.CompilerParams(
                    dimension_semantics=("parallel",),
                    vmem_limit_bytes=_vmem_limit_bytes(TS, D, inputs.dtype,
                                                       vmem_cap)),
            )(x2, gamma, beta)
            return out.reshape(B, S, D)

        # ---- conditional path --------------------------------------------------
        assert cond is not None and cond.ndim == 2 and cond.shape[0] == B
        cond32 = cond.astype(jnp.float32)
        if self.hidden_units is not None:
            # tiny optional projection (glue) done in plain JAX
            cond32 = cond32 @ self.hidden_dense_w.T

        # Precompute per-batch conditional gamma/beta OUTSIDE the kernel:
        # one small (B,C)x(C,D) matmul instead of a degenerate per-step matvec.
        if self.scale:
            gamma_b = gamma.astype(jnp.float32) + cond32 @ self.gamma_dense_w.T  # (B, D)
        else:
            gamma_b = jnp.broadcast_to(gamma.astype(jnp.float32), (B, D))
        if self.center:
            beta_b = beta.astype(jnp.float32) + cond32 @ self.beta_dense_w.T     # (B, D)
        else:
            beta_b = jnp.broadcast_to(beta.astype(jnp.float32), (B, D))
        gamma_b = gamma_b.reshape(B, 1, D)
        beta_b = beta_b.reshape(B, 1, D)

        TB, TS = _choose_cond_tiles(B, S, D, inputs.dtype, tile_budget)
        grid = (B // TB, pl.cdiv(S, TS))

        x_spec = pl.BlockSpec((TB, TS, D), lambda b, s: (b, s, 0))
        gb_spec = pl.BlockSpec((TB, 1, D), lambda b, s: (b, 0, 0))

        out = pl.pallas_call(
            kernel,
            out_shape=jax.ShapeDtypeStruct((B, S, D), inputs.dtype),
            grid=grid,
            in_specs=[x_spec, gb_spec, gb_spec],
            out_specs=x_spec,
            compiler_params=pltpu.CompilerParams(
                dimension_semantics=("parallel", "parallel"),
                vmem_limit_bytes=_vmem_limit_bytes(TB * TS, D, inputs.dtype,
                                                   vmem_cap)),
        )(inputs, gamma_b, beta_b)
        return out


# ----------------------------- reference -----------------------------------------

def _ref_forward(ln: LayerNorm, inputs, cond=None):
    """Pure-JAX re-implementation of the PyTorch forward (for validation)."""
    if ln.conditional:
        c = cond
        if ln.hidden_units is not None:
            c = c @ ln.hidden_dense_w.T
        cond_b = c[:, None, :]                                  # unsqueeze(1)
        beta = (cond_b @ ln.beta_dense_w.T) + ln.beta[0] if ln.center else None
        gamma = (cond_b @ ln.gamma_dense_w.T) + ln.gamma[0] if ln.scale else None
    else:
        beta = ln.beta[0] if ln.center else None
        gamma = ln.gamma[0] if ln.scale else None

    out = inputs
    if ln.center:
        mean = jnp.mean(out, axis=-1, keepdims=True)
        out = out - mean
    if ln.scale:
        variance = jnp.mean(out ** 2, axis=-1, keepdims=True)
        std = (variance + ln.epsilon) ** 2
        out = out / std
        out = out * gamma
    if ln.center:
        out = out + beta
    return out


# ----------------------------- demo ------------------------------------------------

if __name__ == "__main__":
    B, S, D, C = 2, 8, 128, 32
    key = jax.random.PRNGKey(0)
    kx, kc, kg, kb = jax.random.split(key, 4)
    x = jax.random.normal(kx, (B, S, D), jnp.float32)
    cond = jax.random.normal(kc, (B, C), jnp.float32)

    # conditional LayerNorm (TPLinker usage); give the dense maps non-zero
    # weights so the conditional path is exercised non-trivially.
    ln_cond = LayerNorm(input_dim=D, cond_dim=C, conditional=True)
    ln_cond.gamma_dense_w = 0.10 * jax.random.normal(kg, (D, C), jnp.float32)
    ln_cond.beta_dense_w = 0.05 * jax.random.normal(kb, (D, C), jnp.float32)
    y_cond = jax.block_until_ready(ln_cond(x, cond))
    ref_cond = _ref_forward(ln_cond, x, cond)
    np.testing.assert_allclose(np.asarray(y_cond), np.asarray(ref_cond),
                               rtol=1e-5, atol=1e-5)

    # plain (non-conditional) LayerNorm
    ln_plain = LayerNorm(input_dim=D)
    y_plain = jax.block_until_ready(ln_plain(x))
    ref_plain = _ref_forward(ln_plain, x)
    np.testing.assert_allclose(np.asarray(y_plain), np.asarray(ref_plain),
                               rtol=1e-5, atol=1e-5)

    # non-sublane-multiple sequence length (full-extent block path, no padding)
    x_odd = jax.random.normal(kx, (3, 6, D), jnp.float32)
    y_odd = jax.block_until_ready(ln_plain(x_odd))
    np.testing.assert_allclose(np.asarray(y_odd),
                               np.asarray(_ref_forward(ln_plain, x_odd)),
                               rtol=1e-5, atol=1e-5)

    print("KERNEL_OK")
</pallas_src>

<mosaic_0001>
module attributes {stable_mosaic.version = 11 : i64} {
  func.func @_ln_rows_kernel(%arg0: i32, %arg1: i32, %arg2: memref<1x8x128xf32, #tpu.memory_space<vmem>>, %arg3: memref<1x1x128xf32, #tpu.memory_space<vmem>>, %arg4: memref<1x1x128xf32, #tpu.memory_space<vmem>>, %arg5: memref<1x8x128xf32, #tpu.memory_space<vmem>>) attributes {dimension_semantics = [#tpu.dimension_semantics<parallel>, #tpu.dimension_semantics<parallel>], iteration_bounds = array<i64: 2, 1>, scalar_prefetch = 0 : i64, scratch_operands = 0 : i64, tpu.core_type = #tpu.core_type<tc>, window_params = [{transform_indices = @transform_0, window_bounds = array<i64: 1, 8, 128>}, {transform_indices = @transform_1, window_bounds = array<i64: 1, 1, 128>}, {transform_indices = @transform_2, window_bounds = array<i64: 1, 1, 128>}, {transform_indices = @transform_3, window_bounds = array<i64: 1, 8, 128>}]} {
    %c0 = arith.constant 0 : index
    %c0_0 = arith.constant 0 : index
    %c0_1 = arith.constant 0 : index
    %0 = vector.load %arg2[%c0, %c0_0, %c0_1] : memref<1x8x128xf32, #tpu.memory_space<vmem>>, vector<1x8x128xf32>
    %cst = arith.constant dense<0.000000e+00> : vector<1x8xf32>
    %1 = vector.multi_reduction <add>, %0, %cst [2] : vector<1x8x128xf32> to vector<1x8xf32>
    %2 = vector.shape_cast %1 : vector<1x8xf32> to vector<1x8x1xf32>
    %cst_2 = arith.constant 1.280000e+02 : f32
    %3 = vector.broadcast %cst_2 : f32 to vector<1x8x1xf32>
    %4 = arith.divf %2, %3 : vector<1x8x1xf32>
    %5 = vector.broadcast %4 : vector<1x8x1xf32> to vector<1x8x128xf32>
    %6 = arith.subf %0, %5 : vector<1x8x128xf32>
    %7 = arith.mulf %6, %6 : vector<1x8x128xf32>
    %cst_3 = arith.constant dense<0.000000e+00> : vector<1x8xf32>
    %8 = vector.multi_reduction <add>, %7, %cst_3 [2] : vector<1x8x128xf32> to vector<1x8xf32>
    %9 = vector.shape_cast %8 : vector<1x8xf32> to vector<1x8x1xf32>
    %cst_4 = arith.constant 1.280000e+02 : f32
    %10 = vector.broadcast %cst_4 : f32 to vector<1x8x1xf32>
    %11 = arith.divf %9, %10 : vector<1x8x1xf32>
    %cst_5 = arith.constant 9.99999996E-13 : f32
    %12 = vector.broadcast %cst_5 : f32 to vector<1x8x1xf32>
    %13 = arith.addf %11, %12 : vector<1x8x1xf32>
    %14 = tpu.reciprocal %13 : vector<1x8x1xf32> -> vector<1x8x1xf32>
    %15 = arith.mulf %14, %14 : vector<1x8x1xf32>
    %16 = vector.broadcast %15 : vector<1x8x1xf32> to vector<1x8x128xf32>
    %17 = arith.mulf %6, %16 : vector<1x8x128xf32>
    %c0_6 = arith.constant 0 : index
    %c0_7 = arith.constant 0 : index
    %c0_8 = arith.constant 0 : index
    %18 = vector.load %arg3[%c0_6, %c0_7, %c0_8] : memref<1x1x128xf32, #tpu.memory_space<vmem>>, vector<1x1x128xf32>
    %19 = vector.broadcast %18 : vector<1x1x128xf32> to vector<1x8x128xf32>
    %20 = arith.mulf %17, %19 : vector<1x8x128xf32>
    %c0_9 = arith.constant 0 : index
    %c0_10 = arith.constant 0 : index
    %c0_11 = arith.constant 0 : index
    %21 = vector.load %arg4[%c0_9, %c0_10, %c0_11] : memref<1x1x128xf32, #tpu.memory_space<vmem>>, vector<1x1x128xf32>
    %22 = vector.broadcast %21 : vector<1x1x128xf32> to vector<1x8x128xf32>
    %23 = arith.addf %20, %22 : vector<1x8x128xf32>
    %c0_12 = arith.constant 0 : index
    %c0_13 = arith.constant 0 : index
    %c0_14 = arith.constant 0 : index
    %24 = vector.load %arg5[%c0_12, %c0_13, %c0_14] : memref<1x8x128xf32, #tpu.memory_space<vmem>>, vector<1x8x128xf32>
    tpu.vector_store %arg5[%c0_12, %c0_13, %c0_14], %23 {strides = array<i32>} : memref<1x8x128xf32, #tpu.memory_space<vmem>>, vector<1x8x128xf32>,
    return
  }
  func.func @transform_0(%arg0: i32, %arg1: i32) -> (i32, i32, i32) {
    %c0_i32 = arith.constant 0 : i32
    %c0_i32_0 = arith.constant 0 : i32
    return %arg0, %arg1, %c0_i32 : i32, i32, i32
  }
  func.func @transform_1(%arg0: i32, %arg1: i32) -> (i32, i32, i32) {
    %c0_i32 = arith.constant 0 : i32
    %c0_i32_0 = arith.constant 0 : i32
    %c0_i32_1 = arith.constant 0 : i32
    return %arg0, %c0_i32, %c0_i32_0 : i32, i32, i32
  }
  func.func @transform_2(%arg0: i32, %arg1: i32) -> (i32, i32, i32) {
    %c0_i32 = arith.constant 0 : i32
    %c0_i32_0 = arith.constant 0 : i32
    %c0_i32_1 = arith.constant 0 : i32
    return %arg0, %c0_i32, %c0_i32_0 : i32, i32, i32
  }
  func.func @transform_3(%arg0: i32, %arg1: i32) -> (i32, i32, i32) {
    %c0_i32 = arith.constant 0 : i32
    %c0_i32_0 = arith.constant 0 : i32
    return %arg0, %arg1, %c0_i32 : i32, i32, i32
  }
}

</mosaic_0001>

<llo_original>
// kernel: tpu_custom_call.1
$region0: #{tpu_custom_call.1}
  #allocation0 [shape = 'u32[]', space=smem, size = 0x4, offset = 0x4, fixed_abs, tag = 'smem constant byte address 0x4 - core index']
  #allocation1 [shape = 'u32[72,128]{1,0:T(1,128)}', space=vmem, size = 0x9000, scoped, tag = 'internal scratch']
  %s0 = inlined_call_operand.hbm [shape: f32[2,8,128], index: 0, kind: input, shape index: {}]
  %s1 = inlined_call_operand.hbm [shape: f32[2,1,128], index: 1, kind: input, shape index: {}]
  %s2 = inlined_call_operand.hbm [shape: f32[2,1,128], index: 2, kind: input, shape index: {}]
  %s3 = inlined_call_operand.hbm [shape: f32[2,8,128], index: 3, kind: output, shape index: {}]
  %s4 = sld [smem:[#allocation0]]
  $region57: #{tpu_custom_call.1} parent=0
    _
  %s6 = ssub.s32 1, %s4
  %s7 = scalar_select 0, %s6, %s4
  $region1: #{tpu_custom_call.1} parent=0
    #allocation2 [shape = 'u8[8192]{0}', space=vmem, size = 0x2000, scoped, tag = 'input window, operand 0']
    #allocation3 [shape = 's32[2]{0}', space=sflag, size = 0x8, scoped, tag = 'scoped memory for tpu_custom_call.1']
    #allocation4 [shape = 's32[2]{0}', space=sflag, size = 0x8, scoped, tag = 'scoped memory for tpu_custom_call.1']
    #allocation5 [shape = 'u8[1024]{0}', space=vmem, size = 0x400, scoped, tag = 'input window, operand 1']
    #allocation6 [shape = 's32[2]{0}', space=sflag, size = 0x8, scoped, tag = 'scoped memory for tpu_custom_call.1']
    #allocation7 [shape = 'u8[1024]{0}', space=vmem, size = 0x400, scoped, tag = 'input window, operand 2']
    #allocation8 [shape = 'u8[8192]{0}', space=vmem, size = 0x2000, scoped, tag = 'output window, operand 0']
    %8 = vsyncpa [#allocation3], 0
    %s9 = scalar_lea.sflag [#allocation3], 1
    %10 = vsyncpa %s9, 0
    %11 = vsyncpa [#allocation6], 0
    %s12 = scalar_lea.sflag [#allocation6], 1
    %13 = vsyncpa %s12, 0
    %14 = vsyncpa [#allocation4], 0
    %s15 = scalar_lea.sflag [#allocation4], 1
    %16 = vsyncpa %s15, 0
    loop: start=0, step=1, limit=4
    $region2: #{tpu_custom_call.1} parent=1 // loop_pre_header
      _
    $region3: #{tpu_custom_call.1} parent=1 // loop_header
      %s18 = sphi 0, %s22
      %p19 = scmp.ge.s32.totalorder %s18, 4
      %s25 = sphi 0, %s37
      %s26 = sphi 0, %s33
      %s27 = sphi 0, %s25
      %s28 = sphi 0, %s26
      %s29 = sphi 0, %s27
      %s30 = sphi 0, %s28
      %s42 = sphi 0, %s44
      %s45 = sphi 0, %s42
      %s46 = sphi 0, %s45
      %s62 = sphi 0, %s46
      %s68 = sphi 0, %s70
      %s71 = sphi 0, %s68
      %s72 = sphi 0, %s71
      %s88 = sphi 0, %s72
      %s94 = sphi 0, %s96
      %s97 = sphi 0, %s94
      %s98 = sphi 0, %s97
      %s114 = sphi 0, %s98
      %s122 = sphi 0, %s124
      %s125 = sphi 0, %s122
      %s126 = sphi 0, %s125
      %s142 = sphi 0, %s126
    $region4: #{tpu_custom_call.1} parent=1 // loop_header_branch
      %21 = sbr.rel (%p19) target = $region8
    $region5: #{tpu_custom_call.1} parent=1 // loop_body
      %s23 = ssub.s32 %s18, 1
      %s24 = ssub.s32 %s18, 2
      %s31 = sadd.s32 1, %s26
      %p32 = scmp.ge.s32.totalorder %s31, 1
      %s33 = scalar_select %p32, 0, %s31
      %s34 = sadd.s32 1, %s25
      %s35 = scalar_select %p32, %s34, %s25
      %p36 = scmp.ge.s32.totalorder %s35, 2
      %s37 = scalar_select %p36, 0, %s35
      %s38 = ssub.s32 %s25, %s37
      %s39 = ssub.s32 %s26, %s33
      %s40 = sor.u32 %s38, %s39
      %p41 = scmp.eq.s32.totalorder %s40, 0
      %s43 = sadd.s32 %s42, 1
      %s44 = scalar_select %p41, %s42, %s43
      %p47 = pneg %p41
      %p48 = scmp.eq.s32.totalorder %s18, 1
      %p49 = por %p47, %p48
      %p50 = scmp.ne.s32.totalorder %s42, %s45
      %p51 = scmp.eq.s32.totalorder %s18, 0
      %p52 = por %p50, %p51
      %p53 = scmp.ne.s32.totalorder %s42, %s45
      %p54 = scmp.eq.s32.totalorder %s23, 1
      %p55 = por %p53, %p54
      %p56 = scmp.ne.s32.totalorder %s45, %s46
      %p57 = scmp.eq.s32.totalorder %s23, 0
      %p58 = por %p56, %p57
      %p59 = scmp.ne.s32.totalorder %s45, %s46
      %p60 = scmp.eq.s32.totalorder %s24, 1
      %p61 = por %p59, %p60
      %p63 = scmp.ne.s32.totalorder %s46, %s62
      %p64 = scmp.eq.s32.totalorder %s24, 0
      %p65 = por %p63, %p64
      %s66 = ssub.s32 %s25, %s37
      %p67 = scmp.eq.s32.totalorder %s66, 0
      %s69 = sadd.s32 %s68, 1
      %s70 = scalar_select %p67, %s68, %s69
      %p73 = pneg %p67
      %p74 = scmp.eq.s32.totalorder %s18, 1
      %p75 = por %p73, %p74
      %p76 = scmp.ne.s32.totalorder %s68, %s71
      %p77 = scmp.eq.s32.totalorder %s18, 0
      %p78 = por %p76, %p77
      %p79 = scmp.ne.s32.totalorder %s68, %s71
      %p80 = scmp.eq.s32.totalorder %s23, 1
      %p81 = por %p79, %p80
      %p82 = scmp.ne.s32.totalorder %s71, %s72
      %p83 = scmp.eq.s32.totalorder %s23, 0
      %p84 = por %p82, %p83
      %p85 = scmp.ne.s32.totalorder %s71, %s72
      %p86 = scmp.eq.s32.totalorder %s24, 1
      %p87 = por %p85, %p86
      %p89 = scmp.ne.s32.totalorder %s72, %s88
      %p90 = scmp.eq.s32.totalorder %s24, 0
      %p91 = por %p89, %p90
      %s92 = ssub.s32 %s25, %s37
      %p93 = scmp.eq.s32.totalorder %s92, 0
      %s95 = sadd.s32 %s94, 1
      %s96 = scalar_select %p93, %s94, %s95
      %p99 = pneg %p93
      %p100 = scmp.eq.s32.totalorder %s18, 1
      %p101 = por %p99, %p100
      %p102 = scmp.ne.s32.totalorder %s94, %s97
      %p103 = scmp.eq.s32.totalorder %s18, 0
      %p104 = por %p102, %p103
      %p105 = scmp.ne.s32.totalorder %s94, %s97
      %p106 = scmp.eq.s32.totalorder %s23, 1
      %p107 = por %p105, %p106
      %p108 = scmp.ne.s32.totalorder %s97, %s98
      %p109 = scmp.eq.s32.totalorder %s23, 0
      %p110 = por %p108, %p109
      %p111 = scmp.ne.s32.totalorder %s97, %s98
      %p112 = scmp.eq.s32.totalorder %s24, 1
      %p113 = por %p111, %p112
      %p115 = scmp.ne.s32.totalorder %s98, %s114
      %p116 = scmp.eq.s32.totalorder %s24, 0
      %p117 = por %p115, %p116
      %s118 = ssub.s32 %s25, %s37
      %s119 = ssub.s32 %s26, %s33
      %s120 = sor.u32 %s118, %s119
      %p121 = scmp.eq.s32.totalorder %s120, 0
      %s123 = sadd.s32 %s122, 1
      %s124 = scalar_select %p121, %s122, %s123
      %p127 = pneg %p121
      %p128 = scmp.eq.s32.totalorder %s18, 1
      %p129 = por %p127, %p128
      %p130 = scmp.ne.s32.totalorder %s122, %s125
      %p131 = scmp.eq.s32.totalorder %s18, 0
      %p132 = por %p130, %p131
      %p133 = scmp.ne.s32.totalorder %s122, %s125
      %p134 = scmp.eq.s32.totalorder %s23, 1
      %p135 = por %p133, %p134
      %p136 = scmp.ne.s32.totalorder %s125, %s126
      %p137 = scmp.eq.s32.totalorder %s23, 0
      %p138 = por %p136, %p137
      %p139 = scmp.ne.s32.totalorder %s125, %s126
      %p140 = scmp.eq.s32.totalorder %s24, 1
      %p141 = por %p139, %p140
      %p143 = scmp.ne.s32.totalorder %s126, %s142
      %p144 = scmp.eq.s32.totalorder %s24, 0
      %p145 = por %p143, %p144
      %p146 = scmp.le.s32.totalorder 1, %s18
      %p147 = scmp.lt.s32.totalorder %s18, 3
      %p148 = pnand %p146, %p147
      %p149 = pneg %p148
      // Predicated region
      $region9: #{tpu_custom_call.1} parent=5 // pred_check
        _
      $region10: #{tpu_custom_call.1} parent=5 // pred_check_branch
        %151 = sbr.rel (%p148) target = $region12
      $region11: #{tpu_custom_call.1} parent=5 // pred_region
        %s152 = ssub.s32 %s18, 1
      $region12: #{tpu_custom_call.1} parent=5 // pred_fallthru
        _
      %p153 = scmp.lt.s32.totalorder %s18, 2
      // Predicated region
      $region13: #{tpu_custom_call.1} parent=5 // pred_check
        %p154 = pneg %p153
      $region14: #{tpu_custom_call.1} parent=5 // pred_check_branch
        %156 = sbr.rel (%p154) target = $region16
      $region15: #{tpu_custom_call.1} parent=5 // pred_region
        // Predicated region
        $region17: #{tpu_custom_call.1} parent=15 // pred_check
          %p157 = pneg %p52
        $region18: #{tpu_custom_call.1} parent=15 // pred_check_branch
          %159 = sbr.rel (%p157) target = $region20
        $region19: #{tpu_custom_call.1} parent=15 // pred_region
          %s160 = sand.u32 %s42, 1
          %s161 = scalar_lea.sflag [#allocation3], %s160
          %s162 = sand.u32 %s42, 1
          %s163 = smul.addr %s162, 8
          %s164 = scalar_lea.vmem [#allocation2], %s163
          %166 = vsyncadd %s161, 0
          %s167 = sadd.s32 %s26, %s25
          %s168 = smul.addr %s167, 8
          %s169 = scalar_lea.hbm %s0, %s168
          %s171 = sshll.u32 %s169, 4
          %s172 = int_to_ptr.hbm [resolvable:$true] %s171
          %s173 = sshll.u32 %s164, 4
          %s174 = int_to_ptr.vmem [resolvable:$true] %s173
          %176 = dma.hbm_to_vmem [thread:$0]  %s172, 128, %s174, %s161
        $region20: #{tpu_custom_call.1} parent=15 // pred_fallthru
          _
        // Predicated region
        $region21: #{tpu_custom_call.1} parent=15 // pred_check
          %p177 = pneg %p78
        $region22: #{tpu_custom_call.1} parent=15 // pred_check_branch
          %179 = sbr.rel (%p177) target = $region24
        $region23: #{tpu_custom_call.1} parent=15 // pred_region
          %s180 = sand.u32 %s18, 1
          %s181 = scalar_lea.sflag [#allocation6], %s180
          %s182 = sand.u32 %s68, 1
          %s183 = scalar_lea.vmem [#allocation5], %s182
          %185 = vsyncadd %s181, 0
          %s186 = scalar_lea.hbm %s1, %s25
          %s188 = sshll.u32 %s186, 4
          %s189 = int_to_ptr.hbm [resolvable:$true] %s188
          %s190 = sshll.u32 %s183, 4
          %s191 = int_to_ptr.vmem [resolvable:$true] %s190
          %193 = dma.hbm_to_vmem [thread:$0]  %s189, 16, %s191, %s181
        $region24: #{tpu_custom_call.1} parent=15 // pred_fallthru
          _
        // Predicated region
        $region25: #{tpu_custom_call.1} parent=15 // pred_check
          %p194 = pneg %p104
        $region26: #{tpu_custom_call.1} parent=15 // pred_check_branch
          %196 = sbr.rel (%p194) target = $region28
        $region27: #{tpu_custom_call.1} parent=15 // pred_region
          %s197 = sand.u32 %s18, 1
          %s198 = scalar_lea.sflag [#allocation6], %s197
          %s199 = sand.u32 %s94, 1
          %s200 = scalar_lea.vmem [#allocation7], %s199
          %202 = vsyncadd %s198, 0
          %s203 = scalar_lea.hbm %s2, %s25
          %s205 = sshll.u32 %s203, 4
          %s206 = int_to_ptr.hbm [resolvable:$true] %s205
          %s207 = sshll.u32 %s200, 4
          %s208 = int_to_ptr.vmem [resolvable:$true] %s207
          %210 = dma.hbm_to_vmem [thread:$0]  %s206, 16, %s208, %s198
        $region28: #{tpu_custom_call.1} parent=15 // pred_fallthru
          _
      $region16: #{tpu_custom_call.1} parent=5 // pred_fallthru
        _
      %p211 = scmp.le.s32.totalorder 1, %s18
      %p212 = scmp.lt.s32.totalorder %s18, 3
      %p213 = pnand %p211, %p212
      %p214 = pneg %p213
      // Predicated region
      $region29: #{tpu_custom_call.1} parent=5 // pred_check
        _
      $region30: #{tpu_custom_call.1} parent=5 // pred_check_branch
        %216 = sbr.rel (%p213) target = $region32
      $region31: #{tpu_custom_call.1} parent=5 // pred_region
        %s217 = ssub.s32 %s18, 1
        %s218 = sand.u32 %s45, 1
        %s219 = scalar_lea.sflag [#allocation3], %s218
        %s220 = sand.u32 %s45, 1
        %s221 = smul.addr %s220, 8
        %s222 = scalar_lea.vmem [#allocation2], %s221
        // Predicated region
        $region33: #{tpu_custom_call.1} parent=31 // pred_check
          %p223 = pneg %p58
        $region34: #{tpu_custom_call.1} parent=31 // pred_check_branch
          %225 = sbr.rel (%p223) target = $region36
        $region35: #{tpu_custom_call.1} parent=31 // pred_region
          %227 = dma.done %s219, 128
        $region36: #{tpu_custom_call.1} parent=31 // pred_fallthru
          _
        %s228 = sand.u32 %s23, 1
        %s229 = scalar_lea.sflag [#allocation6], %s228
        %s230 = sand.u32 %s71, 1
        %s231 = scalar_lea.vmem [#allocation5], %s230
        // Predicated region
        $region37: #{tpu_custom_call.1} parent=31 // pred_check
          %p232 = pneg %p84
        $region38: #{tpu_custom_call.1} parent=31 // pred_check_branch
          %234 = sbr.rel (%p232) target = $region40
        $region39: #{tpu_custom_call.1} parent=31 // pred_region
          %236 = dma.done %s229, 16
        $region40: #{tpu_custom_call.1} parent=31 // pred_fallthru
          _
        %s237 = sand.u32 %s23, 1
        %s238 = scalar_lea.sflag [#allocation6], %s237
        %s239 = sand.u32 %s97, 1
        %s240 = scalar_lea.vmem [#allocation7], %s239
        // Predicated region
        $region41: #{tpu_custom_call.1} parent=31 // pred_check
          %p241 = pneg %p110
        $region42: #{tpu_custom_call.1} parent=31 // pred_check_branch
          %243 = sbr.rel (%p241) target = $region44
        $region43: #{tpu_custom_call.1} parent=31 // pred_region
          %245 = dma.done %s238, 16
        $region44: #{tpu_custom_call.1} parent=31 // pred_fallthru
          _
        %s246 = sand.u32 %s45, 1
        %s247 = scalar_lea.sflag [#allocation3], %s246
        %s248 = sand.u32 %s45, 1
        %s249 = smul.addr %s248, 8
        %s250 = scalar_lea.vmem [#allocation2], %s249
        %p251 = pneg %p58
        %p252 = pneg %p55
        %s253 = sand.u32 %s23, 1
        %s254 = scalar_lea.sflag [#allocation6], %s253
        %s255 = sand.u32 %s71, 1
        %s256 = scalar_lea.vmem [#allocation5], %s255
        %p257 = pneg %p84
        %p258 = pneg %p81
        %s259 = sand.u32 %s23, 1
        %s260 = scalar_lea.sflag [#allocation6], %s259
        %s261 = sand.u32 %s97, 1
        %s262 = scalar_lea.vmem [#allocation7], %s261
        %p263 = pneg %p110
        %p264 = pneg %p107
        %p265 = pneg %p138
        %p266 = pneg %p135
        %s267 = sand.u32 %s125, 1
        %s268 = scalar_lea.sflag [#allocation4], %s267
        %s269 = sand.u32 %s125, 1
        %s270 = smul.addr %s269, 8
        %s271 = scalar_lea.vmem [#allocation8], %s270
        %v272 = vld [vmem:[%s222] sm:$0xff]
        %273 = vadd.xlane.f32.xlu0 %v272
        %v274 = vpop.xlane.xlu0 %273
        %v275 = vrcp.pop 128.0
        %v276 = vmul.f32 128.0, %v275
        %v277 = vsub.f32 1.0, %v276
        %v278 = vmul.f32 %v275, %v277
        %v279 = vadd.f32 %v275, %v278
        %vm280 = vweird.f32 %v275
        %v281 = vsel %vm280, %v275, %v279
        %v282 = vmul.f32 %v274, %v281
        %v283 = vsub.f32 %v272, %v282
        %v284 = vmul.f32 %v283, %v283
        %285 = vadd.xlane.f32.xlu0 %v284
        %v286 = vpop.xlane.xlu0 %285
        %v287 = vmul.f32 %v286, %v281
        %v288 = vadd.f32 %v287, 1e-12
        %v289 = vrcp.pop %v288
        %v290 = vmul.f32 %v288, %v289
        %v291 = vsub.f32 1.0, %v290
        %v292 = vmul.f32 %v289, %v291
        %v293 = vadd.f32 %v289, %v292
        %vm294 = vweird.f32 %v288
        %vm295 = vweird.f32 %v289
        %vm296 = vmor %vm294, %vm295
        %v297 = vsel %vm296, %v289, %v293
        %v298 = vand.u32 2147483647, %v288
        %vm299 = vcmp.eq.f32.partialorder %v298, 8.507059e+37
        %v300 = vand.u32 %v288, 2147483648
        %v301 = vor.u32 1.1754944e-38, %v300
        %v302 = vsel %vm299, %v301, %v297
        %v303 = vmul.f32 %v302, %v302
        %v304 = vmul.f32 %v283, %v303
        %v305 = vld [vmem:[%s231] sm:$0x1]
        %v307 = vperm.slane %v305, 0
        %v309 = vmul.f32 %v304, %v307
        %v310 = vld [vmem:[%s240] sm:$0x1]
        %v312 = vperm.slane %v310, 0
        %v314 = vadd.f32 %v309, %v312
        %315 = vst [vmem:[%s271] sm:$0xff] %v314
        %s316 = sand.u32 %s125, 1
        %s317 = scalar_lea.sflag [#allocation4], %s316
        %s318 = sand.u32 %s125, 1
        %s319 = smul.addr %s318, 8
        %s320 = scalar_lea.vmem [#allocation8], %s319
        // Predicated region
        $region45: #{tpu_custom_call.1} parent=31 // pred_check
          %p321 = pneg %p135
        $region46: #{tpu_custom_call.1} parent=31 // pred_check_branch
          %323 = sbr.rel (%p321) target = $region48
        $region47: #{tpu_custom_call.1} parent=31 // pred_region
          %325 = vsyncadd %s317, 0
          %s326 = sadd.s32 %s28, %s27
          %s327 = smul.addr %s326, 8
          %s328 = scalar_lea.hbm %s3, %s327
          %s330 = sshll.u32 %s320, 4
          %s331 = int_to_ptr.vmem [resolvable:$true] %s330
          %s332 = sshll.u32 %s328, 4
          %s333 = int_to_ptr.hbm [resolvable:$true] %s332
          %335 = dma.vmem_to_hbm [thread:$0]  %s331, 128, %s333, %s317
        $region48: #{tpu_custom_call.1} parent=31 // pred_fallthru
          _
      $region32: #{tpu_custom_call.1} parent=5 // pred_fallthru
        _
      %p336 = scmp.le.s32.totalorder 2, %s18
      // Predicated region
      $region49: #{tpu_custom_call.1} parent=5 // pred_check
        %p337 = pneg %p336
      $region50: #{tpu_custom_call.1} parent=5 // pred_check_branch
        %339 = sbr.rel (%p337) target = $region52
      $region51: #{tpu_custom_call.1} parent=5 // pred_region
        %s340 = ssub.s32 %s18, 2
        // Predicated region
        $region53: #{tpu_custom_call.1} parent=51 // pred_check
          %p341 = pneg %p141
        $region54: #{tpu_custom_call.1} parent=51 // pred_check_branch
          %343 = sbr.rel (%p341) target = $region56
        $region55: #{tpu_custom_call.1} parent=51 // pred_region
          %s344 = sand.u32 %s126, 1
          %s345 = scalar_lea.sflag [#allocation4], %s344
          %s346 = sand.u32 %s126, 1
          %s347 = smul.addr %s346, 8
          %s348 = scalar_lea.vmem [#allocation8], %s347
          %350 = dma.done %s345, 128
        $region56: #{tpu_custom_call.1} parent=51 // pred_fallthru
          _
      $region52: #{tpu_custom_call.1} parent=5 // pred_fallthru
        _
    $region6: #{tpu_custom_call.1} parent=1 // loop_footer
      %s22 = sadd.s32 1, %s18
    $region7: #{tpu_custom_call.1} parent=1 // loop_footer_branch
      %17 = sbr.rel target = $region3
    $region8: #{tpu_custom_call.1} parent=1 // loop_exit
      _
    %351 = vsyncpa [#allocation3], 1
    %s352 = scalar_lea.sflag [#allocation3], 1
    %353 = vsyncpa %s352, 1
    %354 = vsyncpa [#allocation6], 1
    %s355 = scalar_lea.sflag [#allocation6], 1
    %356 = vsyncpa %s355, 1
    %357 = vsyncpa [#allocation4], 1
    %s358 = scalar_lea.sflag [#allocation4], 1
    %359 = vsyncpa %s358, 1

</llo_original>
